<compile_context>
chip_gen: v5e
topology: v5e:2x2
jax: 0.10.0
libtpu: 0.0.40
codegen_flags: <defaults>
</compile_context>

<pallas_src>
import functools

import jax
import jax.numpy as jnp
from jax.experimental import pallas as pl
from jax.experimental.pallas import tpu as pltpu


def _recover_kernel(x_ref, lr_ref, o_ref, *, s):
    # x_ref / o_ref block: (1, THL, s*W*s)  -- lane-dense HR data
    # lr_ref block:        (1, THL, W)      -- low-resolution density map
    lr = lr_ref[0]                                   # (THL, W)
    thl, w = lr.shape
    wo = w * s                                       # HR width

    if s == 1:                                       # upsample is the identity
        o_ref[0] = x_ref[0] * lr.astype(x_ref.dtype)
        return

    # ---- column expansion W -> W*s (nearest neighbour) on the MXU ----------
    # rep[k, c] = 1  iff  c // s == k   (exact 0/1 matrix, built from iota).
    c = jax.lax.broadcasted_iota(jnp.int32, (w, wo), 1)
    k = jax.lax.broadcasted_iota(jnp.int32, (w, wo), 0)
    rep = ((c >= k * s) & (c < (k + 1) * s)).astype(jnp.float32)
    lr_w = jnp.dot(lr.astype(jnp.float32), rep,
                   preferred_element_type=jnp.float32)        # (THL, W*s), exact

    # ---- row expansion: the s HR rows of one LR row sit consecutively along
    # the lane axis of the (THL, s*W*s) view, so replication is a lane concat.
    lr_full = jnp.concatenate([lr_w] * s, axis=-1)            # (THL, s*W*s)

    o_ref[0] = x_ref[0] * lr_full.astype(x_ref.dtype)


def recover_from_density(x, lr_img, upscale_factor, *, target_block_bytes=2 << 20):
    """x: (N, C, H*s, W*s), lr_img: (N, C, H, W) -> (N, C, H*s, W*s)."""
    s = int(upscale_factor)
    N, C, Ho, Wo = x.shape
    Nl, Cl, H, W = lr_img.shape
    assert (N, C) == (Nl, Cl) and Ho == H * s and Wo == W * s

    if lr_img.dtype != x.dtype:
        # TODO(synk): PyTorch type-promotion rules may differ for mixed dtypes.
        lr_img = lr_img.astype(x.dtype)

    NC = N * C
    # Free (metadata-only) views of the contiguous NCHW tensors.
    x3 = x.reshape(NC, H, s * Wo)      # s HR rows per LR row, along the lane axis
    lr3 = lr_img.reshape(NC, H, W)     # low-resolution, fetched as-is

    itemsize = x.dtype.itemsize
    row_bytes = s * Wo * itemsize                       # HR bytes per LR row
    sub = 8 * (4 // min(4, itemsize))                   # 8 (f32) / 16 (bf16) / 32 (int8)
    thl = max(sub, (target_block_bytes // row_bytes) // sub * sub)
    if thl >= H:
        thl = H                                         # full dim is always legal
    n_row_tiles = pl.cdiv(H, thl)

    # VMEM budget: 2-deep pipelining of x-in / out / lr plus f32 temporaries.
    xb = thl * s * Wo * itemsize
    lrb = thl * W * lr_img.dtype.itemsize
    scratch = 4 * (W * Wo + thl * Wo + 2 * thl * s * Wo) + xb
    vmem_need = 4 * xb + 2 * lrb + scratch + (2 << 20)
    vmem_limit = int(min(max(vmem_need, 8 << 20), 64 << 20))

    kernel = functools.partial(_recover_kernel, s=s)
    out3 = pl.pallas_call(
        kernel,
        out_shape=jax.ShapeDtypeStruct((NC, H, s * Wo), x.dtype),
        grid_spec=pltpu.PrefetchScalarGridSpec(
            num_scalar_prefetch=0,
            grid=(NC, n_row_tiles),
            in_specs=[
                pl.BlockSpec((1, thl, s * Wo), lambda i, j: (i, j, 0)),
                pl.BlockSpec((1, thl, W), lambda i, j: (i, j, 0)),
            ],
            out_specs=pl.BlockSpec((1, thl, s * Wo), lambda i, j: (i, j, 0)),
        ),
        compiler_params=pltpu.CompilerParams(
            dimension_semantics=("parallel", "parallel"),
            vmem_limit_bytes=vmem_limit),
    )(x3, lr3)

    return out3.reshape(N, C, Ho, Wo)


if __name__ == "__main__":
    key = jax.random.PRNGKey(0)
    kx, kl = jax.random.split(key)

    # Small shapes consistent with the module's forward: lr_img is the
    # low-resolution density map, x is the already-high-resolution input.
    N, C, H, W, s = 2, 4, 32, 32, 4
    x = jax.random.normal(kx, (N, C, H * s, W * s), dtype=jnp.float32)
    lr_img = jax.random.normal(kl, (N, C, H, W), dtype=jnp.float32)

    out = jax.block_until_ready(recover_from_density(x, lr_img, s))

    # Pure-JAX reference: nearest-neighbour upsample (integer factor) + multiply.
    up = jnp.repeat(jnp.repeat(lr_img, s, axis=2), s, axis=3)
    ref = x * up

    assert out.shape == (N, C, H * s, W * s)
    assert out.dtype == x.dtype
    assert jnp.allclose(out, ref, atol=1e-6, rtol=1e-6)
    print("KERNEL_OK")
</pallas_src>

<mosaic_0001>
module attributes {stable_mosaic.version = 11 : i64} {
  func.func @_recover_kernel(%arg0: i32, %arg1: i32, %arg2: memref<1x32x512xf32, #tpu.memory_space<vmem>>, %arg3: memref<1x32x32xf32, #tpu.memory_space<vmem>>, %arg4: memref<1x32x512xf32, #tpu.memory_space<vmem>>) attributes {dimension_semantics = [#tpu.dimension_semantics<parallel>, #tpu.dimension_semantics<parallel>], iteration_bounds = array<i64: 8, 1>, scalar_prefetch = 0 : i64, scratch_operands = 0 : i64, tpu.core_type = #tpu.core_type<tc>, window_params = [{transform_indices = @transform_0, window_bounds = array<i64: 1, 32, 512>}, {transform_indices = @transform_1, window_bounds = array<i64: 1, 32, 32>}, {transform_indices = @transform_2, window_bounds = array<i64: 1, 32, 512>}]} {
    %c0 = arith.constant 0 : index
    %c0_0 = arith.constant 0 : index
    %c0_1 = arith.constant 0 : index
    %0 = vector.load %arg3[%c0, %c0_0, %c0_1] : memref<1x32x32xf32, #tpu.memory_space<vmem>>, vector<1x32x32xf32>
    %1 = vector.shape_cast %0 : vector<1x32x32xf32> to vector<32x32xf32>
    %2 = tpu.iota {dimensions = array<i32: 1>} : vector<32x128xi32>
    %3 = tpu.iota {dimensions = array<i32: 0>} : vector<32x128xi32>
    %c4_i32 = arith.constant 4 : i32
    %4 = vector.broadcast %c4_i32 : i32 to vector<32x128xi32>
    %5 = arith.muli %3, %4 : vector<32x128xi32>
    %6 = arith.cmpi sge, %2, %5 : vector<32x128xi32>
    %c1_i32 = arith.constant 1 : i32
    %7 = vector.broadcast %c1_i32 : i32 to vector<32x128xi32>
    %8 = arith.addi %3, %7 : vector<32x128xi32>
    %c4_i32_2 = arith.constant 4 : i32
    %9 = vector.broadcast %c4_i32_2 : i32 to vector<32x128xi32>
    %10 = arith.muli %8, %9 : vector<32x128xi32>
    %11 = arith.cmpi slt, %2, %10 : vector<32x128xi32>
    %12 = arith.andi %6, %11 : vector<32x128xi1>
    %13 = arith.extui %12 : vector<32x128xi1> to vector<32x128xi32>
    %14 = arith.sitofp %13 : vector<32x128xi32> to vector<32x128xf32>
    %cst = arith.constant dense<0.000000e+00> : vector<32x128xf32>
    %15 = tpu.matmul %1, %14, %cst {dimension_numbers = #tpu.dot_dimension_numbers<[1], [0], [0], [1], [0, 0, 1, 1], [], []>} : vector<32x32xf32>, vector<32x128xf32>, vector<32x128xf32> -> vector<32x128xf32>
    %16 = tpu.concatenate %15, %15, %15, %15 in 1 : vector<32x128xf32>, vector<32x128xf32>, vector<32x128xf32>, vector<32x128xf32> -> vector<32x512xf32>
    %c0_3 = arith.constant 0 : index
    %c0_4 = arith.constant 0 : index
    %c0_5 = arith.constant 0 : index
    %17 = vector.load %arg2[%c0_3, %c0_4, %c0_5] : memref<1x32x512xf32, #tpu.memory_space<vmem>>, vector<1x32x512xf32>
    %18 = vector.shape_cast %17 : vector<1x32x512xf32> to vector<32x512xf32>
    %19 = arith.mulf %18, %16 : vector<32x512xf32>
    %c0_6 = arith.constant 0 : index
    %c0_7 = arith.constant 0 : index
    %c0_8 = arith.constant 0 : index
    %20 = vector.load %arg4[%c0_6, %c0_7, %c0_8] : memref<1x32x512xf32, #tpu.memory_space<vmem>>, vector<1x32x512xf32>
    %21 = vector.shape_cast %20 : vector<1x32x512xf32> to vector<32x512xf32>
    %22 = vector.shape_cast %19 : vector<32x512xf32> to vector<1x32x512xf32>
    tpu.vector_store %arg4[%c0_6, %c0_7, %c0_8], %22 {strides = array<i32>} : memref<1x32x512xf32, #tpu.memory_space<vmem>>, vector<1x32x512xf32>,
    return
  }
  func.func @transform_0(%arg0: i32, %arg1: i32) -> (i32, i32, i32) {
    %c0_i32 = arith.constant 0 : i32
    %c0_i32_0 = arith.constant 0 : i32
    return %arg0, %arg1, %c0_i32 : i32, i32, i32
  }
  func.func @transform_1(%arg0: i32, %arg1: i32) -> (i32, i32, i32) {
    %c0_i32 = arith.constant 0 : i32
    %c0_i32_0 = arith.constant 0 : i32
    return %arg0, %arg1, %c0_i32 : i32, i32, i32
  }
  func.func @transform_2(%arg0: i32, %arg1: i32) -> (i32, i32, i32) {
    %c0_i32 = arith.constant 0 : i32
    %c0_i32_0 = arith.constant 0 : i32
    return %arg0, %arg1, %c0_i32 : i32, i32, i32
  }
}

</mosaic_0001>

<llo_original>
// kernel: tpu_custom_call.1
$region0: #{tpu_custom_call.1}
  #allocation0 [shape = 'u32[]', space=smem, size = 0x4, offset = 0x4, fixed_abs, tag = 'smem constant byte address 0x4 - core index']
  #allocation1 [shape = 'u32[72,128]{1,0:T(1,128)}', space=vmem, size = 0x9000, scoped, tag = 'internal scratch']
  %s0 = inlined_call_operand.hbm [shape: f32[8,32,512], index: 0, kind: input, shape index: {}]
  %s1 = inlined_call_operand.hbm [shape: f32[8,32,32], index: 1, kind: input, shape index: {}]
  %s2 = inlined_call_operand.hbm [shape: f32[8,32,512], index: 2, kind: output, shape index: {}]
  %s3 = sld [smem:[#allocation0]]
  $region49: #{tpu_custom_call.1} parent=0
    _
  %s5 = ssub.s32 1, %s3
  %s6 = scalar_select 0, %s5, %s3
  $region1: #{tpu_custom_call.1} parent=0
    #allocation2 [shape = 'u8[131072]{0}', space=vmem, size = 0x20000, scoped, tag = 'input window, operand 0']
    #allocation3 [shape = 's32[2]{0}', space=sflag, size = 0x8, scoped, tag = 'scoped memory for tpu_custom_call.1']
    #allocation4 [shape = 's32[2]{0}', space=sflag, size = 0x8, scoped, tag = 'scoped memory for tpu_custom_call.1']
    #allocation5 [shape = 'u8[32768]{0}', space=vmem, size = 0x8000, scoped, tag = 'input window, operand 1']
    #allocation6 [shape = 's32[2]{0}', space=sflag, size = 0x8, scoped, tag = 'scoped memory for tpu_custom_call.1']
    #allocation7 [shape = 'u8[131072]{0}', space=vmem, size = 0x20000, scoped, tag = 'output window, operand 0']
    %7 = vsyncpa [#allocation3], 0
    %s8 = scalar_lea.sflag [#allocation3], 1
    %9 = vsyncpa %s8, 0
    %10 = vsyncpa [#allocation6], 0
    %s11 = scalar_lea.sflag [#allocation6], 1
    %12 = vsyncpa %s11, 0
    %13 = vsyncpa [#allocation4], 0
    %s14 = scalar_lea.sflag [#allocation4], 1
    %15 = vsyncpa %s14, 0
    loop: start=0, step=1, limit=10
    $region2: #{tpu_custom_call.1} parent=1 // loop_pre_header
      _
    $region3: #{tpu_custom_call.1} parent=1 // loop_header
      %s17 = sphi 0, %s21
      %p18 = scmp.ge.s32.totalorder %s17, 10
      %s24 = sphi 0, %s36
      %s25 = sphi 0, %s32
      %s26 = sphi 0, %s24
      %s27 = sphi 0, %s25
      %s28 = sphi 0, %s26
      %s29 = sphi 0, %s27
      %s41 = sphi 0, %s43
      %s44 = sphi 0, %s41
      %s45 = sphi 0, %s44
      %s61 = sphi 0, %s45
      %s69 = sphi 0, %s71
      %s72 = sphi 0, %s69
      %s73 = sphi 0, %s72
      %s89 = sphi 0, %s73
      %s97 = sphi 0, %s99
      %s100 = sphi 0, %s97
      %s101 = sphi 0, %s100
      %s117 = sphi 0, %s101
    $region4: #{tpu_custom_call.1} parent=1 // loop_header_branch
      %20 = sbr.rel (%p18) target = $region8
    $region5: #{tpu_custom_call.1} parent=1 // loop_body
      %s22 = ssub.s32 %s17, 1
      %s23 = ssub.s32 %s17, 2
      %s30 = sadd.s32 1, %s25
      %p31 = scmp.ge.s32.totalorder %s30, 1
      %s32 = scalar_select %p31, 0, %s30
      %s33 = sadd.s32 1, %s24
      %s34 = scalar_select %p31, %s33, %s24
      %p35 = scmp.ge.s32.totalorder %s34, 8
      %s36 = scalar_select %p35, 0, %s34
      %s37 = ssub.s32 %s24, %s36
      %s38 = ssub.s32 %s25, %s32
      %s39 = sor.u32 %s37, %s38
      %p40 = scmp.eq.s32.totalorder %s39, 0
      %s42 = sadd.s32 %s41, 1
      %s43 = scalar_select %p40, %s41, %s42
      %p46 = pneg %p40
      %p47 = scmp.eq.s32.totalorder %s17, 7
      %p48 = por %p46, %p47
      %p49 = scmp.ne.s32.totalorder %s41, %s44
      %p50 = scmp.eq.s32.totalorder %s17, 0
      %p51 = por %p49, %p50
      %p52 = scmp.ne.s32.totalorder %s41, %s44
      %p53 = scmp.eq.s32.totalorder %s22, 7
      %p54 = por %p52, %p53
      %p55 = scmp.ne.s32.totalorder %s44, %s45
      %p56 = scmp.eq.s32.totalorder %s22, 0
      %p57 = por %p55, %p56
      %p58 = scmp.ne.s32.totalorder %s44, %s45
      %p59 = scmp.eq.s32.totalorder %s23, 7
      %p60 = por %p58, %p59
      %p62 = scmp.ne.s32.totalorder %s45, %s61
      %p63 = scmp.eq.s32.totalorder %s23, 0
      %p64 = por %p62, %p63
      %s65 = ssub.s32 %s24, %s36
      %s66 = ssub.s32 %s25, %s32
      %s67 = sor.u32 %s65, %s66
      %p68 = scmp.eq.s32.totalorder %s67, 0
      %s70 = sadd.s32 %s69, 1
      %s71 = scalar_select %p68, %s69, %s70
      %p74 = pneg %p68
      %p75 = scmp.eq.s32.totalorder %s17, 7
      %p76 = por %p74, %p75
      %p77 = scmp.ne.s32.totalorder %s69, %s72
      %p78 = scmp.eq.s32.totalorder %s17, 0
      %p79 = por %p77, %p78
      %p80 = scmp.ne.s32.totalorder %s69, %s72
      %p81 = scmp.eq.s32.totalorder %s22, 7
      %p82 = por %p80, %p81
      %p83 = scmp.ne.s32.totalorder %s72, %s73
      %p84 = scmp.eq.s32.totalorder %s22, 0
      %p85 = por %p83, %p84
      %p86 = scmp.ne.s32.totalorder %s72, %s73
      %p87 = scmp.eq.s32.totalorder %s23, 7
      %p88 = por %p86, %p87
      %p90 = scmp.ne.s32.totalorder %s73, %s89
      %p91 = scmp.eq.s32.totalorder %s23, 0
      %p92 = por %p90, %p91
      %s93 = ssub.s32 %s24, %s36
      %s94 = ssub.s32 %s25, %s32
      %s95 = sor.u32 %s93, %s94
      %p96 = scmp.eq.s32.totalorder %s95, 0
      %s98 = sadd.s32 %s97, 1
      %s99 = scalar_select %p96, %s97, %s98
      %p102 = pneg %p96
      %p103 = scmp.eq.s32.totalorder %s17, 7
      %p104 = por %p102, %p103
      %p105 = scmp.ne.s32.totalorder %s97, %s100
      %p106 = scmp.eq.s32.totalorder %s17, 0
      %p107 = por %p105, %p106
      %p108 = scmp.ne.s32.totalorder %s97, %s100
      %p109 = scmp.eq.s32.totalorder %s22, 7
      %p110 = por %p108, %p109
      %p111 = scmp.ne.s32.totalorder %s100, %s101
      %p112 = scmp.eq.s32.totalorder %s22, 0
      %p113 = por %p111, %p112
      %p114 = scmp.ne.s32.totalorder %s100, %s101
      %p115 = scmp.eq.s32.totalorder %s23, 7
      %p116 = por %p114, %p115
      %p118 = scmp.ne.s32.totalorder %s101, %s117
      %p119 = scmp.eq.s32.totalorder %s23, 0
      %p120 = por %p118, %p119
      %p121 = scmp.le.s32.totalorder 1, %s17
      %p122 = scmp.lt.s32.totalorder %s17, 9
      %p123 = pnand %p121, %p122
      %p124 = pneg %p123
      // Predicated region
      $region9: #{tpu_custom_call.1} parent=5 // pred_check
        _
      $region10: #{tpu_custom_call.1} parent=5 // pred_check_branch
        %126 = sbr.rel (%p123) target = $region12
      $region11: #{tpu_custom_call.1} parent=5 // pred_region
        %s127 = ssub.s32 %s17, 1
      $region12: #{tpu_custom_call.1} parent=5 // pred_fallthru
        _
      %p128 = scmp.lt.s32.totalorder %s17, 8
      // Predicated region
      $region13: #{tpu_custom_call.1} parent=5 // pred_check
        %p129 = pneg %p128
      $region14: #{tpu_custom_call.1} parent=5 // pred_check_branch
        %131 = sbr.rel (%p129) target = $region16
      $region15: #{tpu_custom_call.1} parent=5 // pred_region
        // Predicated region
        $region17: #{tpu_custom_call.1} parent=15 // pred_check
          %p132 = pneg %p51
        $region18: #{tpu_custom_call.1} parent=15 // pred_check_branch
          %134 = sbr.rel (%p132) target = $region20
        $region19: #{tpu_custom_call.1} parent=15 // pred_region
          %s135 = sand.u32 %s41, 1
          %s136 = scalar_lea.sflag [#allocation3], %s135
          %s137 = sand.u32 %s41, 1
          %s138 = smul.addr %s137, 128
          %s139 = scalar_lea.vmem [#allocation2], %s138
          %s140 = smul.u32 4, %s25
          %142 = vsyncadd %s136, 0
          %s143 = smul.addr %s140, 4
          %s144 = smul.addr %s24, 16
          %s145 = sadd.s32 %s143, %s144
          %s146 = smul.addr %s145, 8
          %s147 = scalar_lea.hbm %s0, %s146
          %s148 = sshll.u32 %s147, 4
          %s149 = int_to_ptr.hbm [resolvable:$true] %s148
          %s150 = sshll.u32 %s139, 4
          %s151 = int_to_ptr.vmem [resolvable:$true] %s150
          %156 = dma.hbm_to_vmem [thread:$0]  %s149, 2048, %s151, %s136, 512, 512, 32
        $region20: #{tpu_custom_call.1} parent=15 // pred_fallthru
          _
        // Predicated region
        $region21: #{tpu_custom_call.1} parent=15 // pred_check
          %p157 = pneg %p79
        $region22: #{tpu_custom_call.1} parent=15 // pred_check_branch
          %159 = sbr.rel (%p157) target = $region24
        $region23: #{tpu_custom_call.1} parent=15 // pred_region
          %s160 = sand.u32 %s69, 1
          %s161 = scalar_lea.sflag [#allocation6], %s160
          %s162 = sand.u32 %s69, 1
          %s163 = smul.addr %s162, 32
          %s164 = scalar_lea.vmem [#allocation5], %s163
          %s165 = smul.u32 4, %s25
          %167 = vsyncadd %s161, 0
          %s168 = smul.addr %s24, 4
          %s169 = sadd.s32 %s165, %s168
          %s170 = smul.addr %s169, 8
          %s171 = scalar_lea.hbm %s1, %s170
          %s172 = sshll.u32 %s171, 4
          %s173 = int_to_ptr.hbm [resolvable:$true] %s172
          %s174 = sshll.u32 %s164, 4
          %s175 = int_to_ptr.vmem [resolvable:$true] %s174
          %180 = dma.hbm_to_vmem [thread:$0]  %s173, 512, %s175, %s161, 128, 128, 8
        $region24: #{tpu_custom_call.1} parent=15 // pred_fallthru
          _
      $region16: #{tpu_custom_call.1} parent=5 // pred_fallthru
        _
      %p181 = scmp.le.s32.totalorder 1, %s17
      %p182 = scmp.lt.s32.totalorder %s17, 9
      %p183 = pnand %p181, %p182
      %p184 = pneg %p183
      // Predicated region
      $region25: #{tpu_custom_call.1} parent=5 // pred_check
        _
      $region26: #{tpu_custom_call.1} parent=5 // pred_check_branch
        %186 = sbr.rel (%p183) target = $region28
      $region27: #{tpu_custom_call.1} parent=5 // pred_region
        %s187 = ssub.s32 %s17, 1
        %s188 = sand.u32 %s44, 1
        %s189 = scalar_lea.sflag [#allocation3], %s188
        %s190 = sand.u32 %s44, 1
        %s191 = smul.addr %s190, 128
        %s192 = scalar_lea.vmem [#allocation2], %s191
        // Predicated region
        $region29: #{tpu_custom_call.1} parent=27 // pred_check
          %p193 = pneg %p57
        $region30: #{tpu_custom_call.1} parent=27 // pred_check_branch
          %195 = sbr.rel (%p193) target = $region32
        $region31: #{tpu_custom_call.1} parent=27 // pred_region
          %197 = dma.done %s189, 2048
        $region32: #{tpu_custom_call.1} parent=27 // pred_fallthru
          _
        %s198 = sand.u32 %s72, 1
        %s199 = scalar_lea.sflag [#allocation6], %s198
        %s200 = sand.u32 %s72, 1
        %s201 = smul.addr %s200, 32
        %s202 = scalar_lea.vmem [#allocation5], %s201
        // Predicated region
        $region33: #{tpu_custom_call.1} parent=27 // pred_check
          %p203 = pneg %p85
        $region34: #{tpu_custom_call.1} parent=27 // pred_check_branch
          %205 = sbr.rel (%p203) target = $region36
        $region35: #{tpu_custom_call.1} parent=27 // pred_region
          %207 = dma.done %s199, 512
        $region36: #{tpu_custom_call.1} parent=27 // pred_fallthru
          _
        %s208 = sand.u32 %s44, 1
        %s209 = scalar_lea.sflag [#allocation3], %s208
        %s210 = sand.u32 %s44, 1
        %s211 = smul.addr %s210, 128
        %s212 = scalar_lea.vmem [#allocation2], %s211
        %p213 = pneg %p57
        %p214 = pneg %p54
        %s215 = sand.u32 %s72, 1
        %s216 = scalar_lea.sflag [#allocation6], %s215
        %s217 = sand.u32 %s72, 1
        %s218 = smul.addr %s217, 32
        %s219 = scalar_lea.vmem [#allocation5], %s218
        %p220 = pneg %p85
        %p221 = pneg %p82
        %p222 = pneg %p113
        %p223 = pneg %p110
        %s224 = sand.u32 %s100, 1
        %s225 = scalar_lea.sflag [#allocation4], %s224
        %s226 = sand.u32 %s100, 1
        %s227 = smul.addr %s226, 128
        %s228 = scalar_lea.vmem [#allocation7], %s227
        %s229 = smul.u32 4, %s27
        %s230 = smul.u32 4, %s27
        %s231 = smul.u32 4, %s27
        %v232 = vld [vmem:[%s202] sm:$0xff]
        %v233 = vld [vmem:[%s202 + $0x8] sm:$0xff]
        %v234 = vld [vmem:[%s202 + $0x10] sm:$0xff]
        %v235 = vld [vmem:[%s202 + $0x18] sm:$0xff]
        %v236 = vlaneseq
        %v237 = vand.u32 %v236, 127
        %v238 = vlaneseq
        %v239 = vshrl.u32 %v238, 7
        %v240 = vadd.s32 %v239, 8
        %v241 = vadd.s32 %v239, 16
        %v242 = vadd.s32 %v239, 24
        %v243 = vmul.u32 %v239, 4
        %v244 = vmul.u32 %v240, 4
        %v245 = vmul.u32 %v241, 4
        %v246 = vmul.u32 %v242, 4
        %vm247 = vcmp.ge.s32.totalorder %v237, %v243
        %vm248 = vcmp.ge.s32.totalorder %v237, %v244
        %vm249 = vcmp.ge.s32.totalorder %v237, %v245
        %vm250 = vcmp.ge.s32.totalorder %v237, %v246
        %v251 = vadd.s32 %v239, 1
        %v252 = vadd.s32 %v240, 1
        %v253 = vadd.s32 %v241, 1
        %v254 = vadd.s32 %v242, 1
        %v255 = vmul.u32 %v251, 4
        %v256 = vmul.u32 %v252, 4
        %v257 = vmul.u32 %v253, 4
        %v258 = vmul.u32 %v254, 4
        %vm259 = vcmp.lt.s32.totalorder %v237, %v255
        %vm260 = vcmp.lt.s32.totalorder %v237, %v256
        %vm261 = vcmp.lt.s32.totalorder %v237, %v257
        %vm262 = vcmp.lt.s32.totalorder %v237, %v258
        %vm263 = vmand %vm247, %vm259
        %vm264 = vmand %vm248, %vm260
        %vm265 = vmand %vm249, %vm261
        %vm266 = vmand %vm250, %vm262
        %v267 = vsel %vm263, 1, 0
        %v268 = vsel %vm264, 1, 0
        %v269 = vsel %vm265, 1, 0
        %v270 = vsel %vm266, 1, 0
        %v271 = vcvt.s32.f32 %v267
        %v272 = vcvt.s32.f32 %v268
        %v273 = vcvt.s32.f32 %v269
        %v274 = vcvt.s32.f32 %v270
        %vm275 = vcmask 261120
        %v277 = vsel %vm275, %v232, 0
        %v280 = vsel %vm275, %v233, 0
        %v283 = vsel %vm275, %v234, 0
        %v286 = vsel %vm275, %v235, 0
        %288 = vmatpush.msra.mxu0 0.0
        %289 = vmatpush.msra.mxu0 0.0
        %290 = vmatpush.msra.mxu0 0.0
        %291 = vmatpush.msra.mxu0 0.0
        %292 = vmatpush.msra.mxu0 0.0
        %293 = vmatpush.msra.mxu0 0.0
        %294 = vmatpush.msra.mxu0 0.0
        %295 = vmatpush.msra.mxu0 0.0
        %296 = vmatpush.msra.mxu0 0.0
        %297 = vmatpush.msra.mxu0 0.0
        %298 = vmatpush.msra.mxu0 0.0
        %299 = vmatpush.msra.mxu0 0.0
        %300 = vmatpush.msra.mxu0 %v274
        %301 = vmatpush.msra.mxu0 %v273
        %302 = vmatpush.msra.mxu0 %v272
        %303 = vmatpush.msra.mxu0 %v271
        %304 = vmatmul.f32.gmra.mxu0 %v277
        %v305 = vpop.f32.mrf.mxu0
        %v306 = vadd.f32 0.0, %v305
        %307 = vmatmul.f32.gmra.mxu0 %v280
        %v308 = vpop.f32.mrf.mxu0
        %v309 = vadd.f32 0.0, %v308
        %310 = vmatmul.f32.gmra.mxu0 %v283
        %v311 = vpop.f32.mrf.mxu0
        %v312 = vadd.f32 0.0, %v311
        %313 = vmatmul.f32.gmra.mxu0 %v286
        %v314 = vpop.f32.mrf.mxu0
        %v315 = vadd.f32 0.0, %v314
        %316 = vdwg.mxu0
        %v317 = vld [vmem:[%s192] sm:$0xff]
        %v318 = vld [vmem:[%s192 + $0x8] sm:$0xff]
        %v319 = vld [vmem:[%s192 + $0x10] sm:$0xff]
        %v320 = vld [vmem:[%s192 + $0x18] sm:$0xff]
        %v321 = vld [vmem:[%s192 + $0x20] sm:$0xff]
        %v322 = vld [vmem:[%s192 + $0x28] sm:$0xff]
        %v323 = vld [vmem:[%s192 + $0x30] sm:$0xff]
        %v324 = vld [vmem:[%s192 + $0x38] sm:$0xff]
        %v325 = vld [vmem:[%s192 + $0x40] sm:$0xff]
        %v326 = vld [vmem:[%s192 + $0x48] sm:$0xff]
        %v327 = vld [vmem:[%s192 + $0x50] sm:$0xff]
        %v328 = vld [vmem:[%s192 + $0x58] sm:$0xff]
        %v329 = vld [vmem:[%s192 + $0x60] sm:$0xff]
        %v330 = vld [vmem:[%s192 + $0x68] sm:$0xff]
        %v331 = vld [vmem:[%s192 + $0x70] sm:$0xff]
        %v332 = vld [vmem:[%s192 + $0x78] sm:$0xff]
        %v333 = vmul.f32 %v317, %v306
        %v334 = vmul.f32 %v318, %v306
        %v335 = vmul.f32 %v319, %v306
        %v336 = vmul.f32 %v320, %v306
        %v337 = vmul.f32 %v321, %v309
        %v338 = vmul.f32 %v322, %v309
        %v339 = vmul.f32 %v323, %v309
        %v340 = vmul.f32 %v324, %v309
        %v341 = vmul.f32 %v325, %v312
        %v342 = vmul.f32 %v326, %v312
        %v343 = vmul.f32 %v327, %v312
        %v344 = vmul.f32 %v328, %v312
        %v345 = vmul.f32 %v329, %v315
        %v346 = vmul.f32 %v330, %v315
        %v347 = vmul.f32 %v331, %v315
        %v348 = vmul.f32 %v332, %v315
        %349 = vst [vmem:[%s228] sm:$0xff] %v333
        %350 = vst [vmem:[%s228 + $0x8] sm:$0xff] %v334
        %351 = vst [vmem:[%s228 + $0x10] sm:$0xff] %v335
        %352 = vst [vmem:[%s228 + $0x18] sm:$0xff] %v336
        %353 = vst [vmem:[%s228 + $0x20] sm:$0xff] %v337
        %354 = vst [vmem:[%s228 + $0x28] sm:$0xff] %v338
        %355 = vst [vmem:[%s228 + $0x30] sm:$0xff] %v339
        %356 = vst [vmem:[%s228 + $0x38] sm:$0xff] %v340
        %357 = vst [vmem:[%s228 + $0x40] sm:$0xff] %v341
        %358 = vst [vmem:[%s228 + $0x48] sm:$0xff] %v342
        %359 = vst [vmem:[%s228 + $0x50] sm:$0xff] %v343
        %360 = vst [vmem:[%s228 + $0x58] sm:$0xff] %v344
        %361 = vst [vmem:[%s228 + $0x60] sm:$0xff] %v345
        %362 = vst [vmem:[%s228 + $0x68] sm:$0xff] %v346
        %363 = vst [vmem:[%s228 + $0x70] sm:$0xff] %v347
        %364 = vst [vmem:[%s228 + $0x78] sm:$0xff] %v348
        %s365 = sand.u32 %s100, 1
        %s366 = scalar_lea.sflag [#allocation4], %s365
        %s367 = sand.u32 %s100, 1
        %s368 = smul.addr %s367, 128
        %s369 = scalar_lea.vmem [#allocation7], %s368
        // Predicated region
        $region37: #{tpu_custom_call.1} parent=27 // pred_check
          %p370 = pneg %p110
        $region38: #{tpu_custom_call.1} parent=27 // pred_check_branch
          %372 = sbr.rel (%p370) target = $region40
        $region39: #{tpu_custom_call.1} parent=27 // pred_region
          %s373 = smul.u32 4, %s27
          %375 = vsyncadd %s366, 0
          %s376 = smul.addr %s373, 4
          %s377 = smul.addr %s26, 16
          %s378 = sadd.s32 %s376, %s377
          %s379 = smul.addr %s378, 8
          %s380 = scalar_lea.hbm %s2, %s379
          %s381 = sshll.u32 %s369, 4
          %s382 = int_to_ptr.vmem [resolvable:$true] %s381
          %s383 = sshll.u32 %s380, 4
          %s384 = int_to_ptr.hbm [resolvable:$true] %s383
          %389 = dma.vmem_to_hbm [thread:$0]  %s382, 2048, %s384, %s366, 512, 512, 32
        $region40: #{tpu_custom_call.1} parent=27 // pred_fallthru
          _
      $region28: #{tpu_custom_call.1} parent=5 // pred_fallthru
        _
      %p390 = scmp.le.s32.totalorder 2, %s17
      // Predicated region
      $region41: #{tpu_custom_call.1} parent=5 // pred_check
        %p391 = pneg %p390
      $region42: #{tpu_custom_call.1} parent=5 // pred_check_branch
        %393 = sbr.rel (%p391) target = $region44
      $region43: #{tpu_custom_call.1} parent=5 // pred_region
        %s394 = ssub.s32 %s17, 2
        // Predicated region
        $region45: #{tpu_custom_call.1} parent=43 // pred_check
          %p395 = pneg %p116
        $region46: #{tpu_custom_call.1} parent=43 // pred_check_branch
          %397 = sbr.rel (%p395) target = $region48
        $region47: #{tpu_custom_call.1} parent=43 // pred_region
          %s398 = sand.u32 %s101, 1
          %s399 = scalar_lea.sflag [#allocation4], %s398
          %s400 = sand.u32 %s101, 1
          %s401 = smul.addr %s400, 128
          %s402 = scalar_lea.vmem [#allocation7], %s401
          %404 = dma.done %s399, 2048
        $region48: #{tpu_custom_call.1} parent=43 // pred_fallthru
          _
      $region44: #{tpu_custom_call.1} parent=5 // pred_fallthru
        _
    $region6: #{tpu_custom_call.1} parent=1 // loop_footer
      %s21 = sadd.s32 1, %s17
    $region7: #{tpu_custom_call.1} parent=1 // loop_footer_branch
      %16 = sbr.rel target = $region3
    $region8: #{tpu_custom_call.1} parent=1 // loop_exit
      _
    %405 = vsyncpa [#allocation3], 1
    %s406 = scalar_lea.sflag [#allocation3], 1
    %407 = vsyncpa %s406, 1
    %408 = vsyncpa [#allocation6], 1
    %s409 = scalar_lea.sflag [#allocation6], 1
    %410 = vsyncpa %s409, 1
    %411 = vsyncpa [#allocation4], 1
    %s412 = scalar_lea.sflag [#allocation4], 1
    %413 = vsyncpa %s412, 1

</llo_original>
